<compile_context>
chip_gen: v7x
topology: tpu7x:2x2x1
jax: 0.10.0
libtpu: 0.0.40
codegen_flags: <defaults>
</compile_context>

<pallas_src>
import math
import hashlib
from collections import OrderedDict, defaultdict
from functools import lru_cache, partial

import jax
import jax.numpy as jnp
from jax.experimental import pallas as pl
from jax.experimental.pallas import tpu as pltpu

WIDE = 512  # lane-dense last dim (multiple of 128) -> unmasked full-width stores


# ----------------------------------------------------------------------------
# Hardware-derived tuning knobs (used by the fallback tiled copy only)
# ----------------------------------------------------------------------------
def _sublane_pack(dtype) -> int:
    """Rows-per-vreg packing: 8 for 4-byte dtypes, 16 for 2-byte, 32 for 1-byte."""
    itemsize = jnp.dtype(dtype).itemsize
    return max(8, (8 * 4) // max(1, itemsize))


@lru_cache(maxsize=None)
def _vmem_capacity_bytes() -> int:
    try:
        return int(pltpu.get_tpu_info().vmem_capacity_bytes)
    except Exception:
        return 128 * 1024 * 1024


def _target_tile_bytes() -> int:
    # v7x (64 MiB VMEM, ~3.2 TB/s HBM) wants ~4 MiB tiles; v5e/v6e (128 MiB VMEM,
    # 0.8-1.4 TB/s) are at/near roofline with 2 MiB tiles.
    return (4 << 20) if _vmem_capacity_bytes() <= (64 << 20) else (2 << 20)


def _vmem_limit_bytes() -> int:
    # Generation-aware scoped-VMEM limit: half of physical, clamped to [16, 64] MiB.
    return max(16 << 20, min(_vmem_capacity_bytes() // 2, 64 << 20))


# ----------------------------------------------------------------------------
# Pallas kernels
# ----------------------------------------------------------------------------
def _dma_copy_kernel(src_hbm, dst_hbm, sem):
    """One long HBM->HBM DMA burst: no VMEM round-trip, no grid, full HBM BW."""
    copy = pltpu.make_async_copy(src_hbm, dst_hbm, sem)
    copy.start()
    copy.wait()


def _dma_copy(slab):
    return pl.pallas_call(
        _dma_copy_kernel,
        out_shape=jax.ShapeDtypeStruct(slab.shape, slab.dtype),
        in_specs=[pl.BlockSpec(memory_space=pl.ANY)],
        out_specs=pl.BlockSpec(memory_space=pl.ANY),
        scratch_shapes=[pltpu.SemaphoreType.DMA],
    )(slab)


def _tiled_copy_kernel(src_ref, dst_ref):
    dst_ref[...] = src_ref[...]


def _tiled_copy(slab, tile_rows):
    """Fallback: auto-pipelined BlockSpec copy (generation-tuned tile size)."""
    rows, wide = slab.shape
    n_tiles = rows // tile_rows
    return pl.pallas_call(
        _tiled_copy_kernel,
        out_shape=jax.ShapeDtypeStruct(slab.shape, slab.dtype),
        grid=(n_tiles,),
        in_specs=[pl.BlockSpec((tile_rows, wide), lambda r: (r, 0))],
        out_specs=pl.BlockSpec((tile_rows, wide), lambda r: (r, 0)),
        compiler_params=pltpu.CompilerParams(
            dimension_semantics=("parallel",) if n_tiles > 1 else ("arbitrary",),
            vmem_limit_bytes=_vmem_limit_bytes(),
        ),
    )(slab)


_DMA_COPY_OK = None


def _dma_copy_supported() -> bool:
    """One-time eager probe: prefer the direct HBM->HBM DMA copy, fall back to
    the pipelined BlockSpec copy if this environment rejects or miscompiles it."""
    global _DMA_COPY_OK
    if _DMA_COPY_OK is None:
        try:
            probe = jnp.arange(8 * WIDE, dtype=jnp.float32).reshape(8, WIDE)
            out = jax.block_until_ready(_dma_copy(probe))
            _DMA_COPY_OK = bool(jnp.array_equal(out, probe))
        except Exception:
            _DMA_COPY_OK = False
    return _DMA_COPY_OK


# ----------------------------------------------------------------------------
# Slab geometry + jitted hot paths
# ----------------------------------------------------------------------------
def _slab_geometry(n_elems, dtype):
    """(rows, tile_rows) for a right-sized (rows, 512) slab holding n_elems."""
    pack = _sublane_pack(dtype)
    need = max(1, math.ceil(n_elems / WIDE))
    rows = pack * math.ceil(need / pack)          # only occupied rows (+ vreg pad)
    bytes_per_row = WIDE * jnp.dtype(dtype).itemsize
    max_tile = max(pack, (_target_tile_bytes() // bytes_per_row) // pack * pack)
    tile_rows = min(rows, max_tile)
    while rows % tile_rows:                        # largest pack-multiple divisor
        tile_rows -= pack
    return rows, tile_rows


@partial(jax.jit, static_argnames=("rows", "tile_rows", "use_dma"))
def _store_slab(tensor, *, rows, tile_rows, use_dma):
    """ravel + minimal pad + Pallas copy into the entry's own slab (all fused)."""
    flat = jnp.ravel(tensor)
    slab = jnp.pad(flat, (0, rows * WIDE - flat.shape[0])).reshape(rows, WIDE)
    return _dma_copy(slab) if use_dma else _tiled_copy(slab, tile_rows)


@partial(jax.jit, static_argnames=("shape", "tile_rows", "use_dma"))
def _load_slab(slab, *, shape, tile_rows, use_dma):
    """Pallas copy out of the slab + slice/reshape back to caller shape (fused)."""
    out = _dma_copy(slab) if use_dma else _tiled_copy(slab, tile_rows)
    n = math.prod(shape) if shape else 1
    return out.reshape(-1)[:n].reshape(shape)


# ----------------------------------------------------------------------------
# PerceptionMemory (JAX / Pallas version)
# ----------------------------------------------------------------------------
class PerceptionMemoryPallas:
    def __init__(self, max_cache_size=4, enable_cache=True, enable_checkpointing=True):
        self.max_cache_size = int(max_cache_size)
        self.enable_cache = enable_cache
        self.enable_checkpointing = enable_checkpointing

        self.cache = OrderedDict()            # key -> {'slab','shape','dtype',...}
        self.tag_index = defaultdict(list)

        self.hit_count = 0
        self.miss_count = 0
        self.eviction_count = 0
        self.total_stored = 0

        # Probe once (eagerly) which copy implementation this environment supports.
        self._use_dma = _dma_copy_supported()
        # TODO(synk): the PyTorch module registers a forward_pre_hook that clears the
        # cache; replicating it would wipe the cache on every forward, so it is
        # intentionally not reproduced here.

    # -- key / index bookkeeping (host side, like the PyTorch module) ---------
    def _generate_key(self, *args) -> str:
        key_str = '|'.join(str(a) for a in args)
        return hashlib.sha256(key_str.encode()).hexdigest()

    def _remove_from_tag_index(self, key):
        for tag in list(self.tag_index.keys()):
            keys = self.tag_index[tag]
            if key in keys:
                keys.remove(key)
            if not keys:
                del self.tag_index[tag]

    # -- cache / retrieve -------------------------------------------------------
    def cache_item(self, tensor, key=None, tags=None, metadata=None):
        if not self.enable_cache:
            return ''
        if key is None:
            # Faithful to the PyTorch module: key derives only from (shape, dtype,
            # device), so two same-shaped tensors share a key and the later one wins.
            key = self._generate_key(tuple(tensor.shape), tensor.dtype, 'tpu')

        if len(self.cache) >= self.max_cache_size:
            evicted_key, _ = self.cache.popitem(last=False)
            self._remove_from_tag_index(evicted_key)
            self.eviction_count += 1

        shape = tuple(tensor.shape)
        rows, tile_rows = _slab_geometry(max(1, math.prod(shape)), tensor.dtype)
        slab = _store_slab(tensor, rows=rows, tile_rows=tile_rows,
                           use_dma=self._use_dma)

        self.cache[key] = {
            'slab': slab,                     # entry owns its own right-sized slab
            'shape': shape,
            'dtype': tensor.dtype,
            'tile_rows': tile_rows,
            'tags': tags or [],
            'metadata': metadata or {},
            'access_count': 0,
        }
        if tags:
            for tag in tags:
                self.tag_index[tag].append(key)
        self.total_stored += 1
        return key

    def _materialize(self, entry, device=None):
        t = _load_slab(entry['slab'], shape=entry['shape'],
                       tile_rows=entry['tile_rows'], use_dma=self._use_dma)
        return jax.device_put(t, device) if device is not None else t

    def retrieve(self, key=None, tag=None, device=None):
        if not self.enable_cache:
            raise RuntimeError('Cache is disabled')
        if key is not None:
            if key in self.cache:
                self.cache.move_to_end(key)
                entry = self.cache[key]
                entry['access_count'] += 1
                self.hit_count += 1
                return self._materialize(entry, device)
            self.miss_count += 1
            raise KeyError(f'Key not found in cache: {key}')
        if tag is not None:
            if tag in self.tag_index:
                keys = self.tag_index[tag]
                results = []
                for k in keys:
                    self.cache.move_to_end(k)
                    entry = self.cache[k]
                    entry['access_count'] += 1
                    results.append(self._materialize(entry, device))
                self.hit_count += len(results)
                return results
            self.miss_count += 1
            raise KeyError(f'Tag not found in cache: {tag}')
        raise ValueError('Either key or tag must be provided')

    def clear_cache(self, key=None, tag=None):
        if key:
            if key in self.cache:
                del self.cache[key]
                self._remove_from_tag_index(key)
            return
        if tag:
            if tag in self.tag_index:
                keys = self.tag_index.pop(tag)
                for k in keys:
                    if k in self.cache:
                        del self.cache[k]
            return
        self.cache.clear()
        self.tag_index.clear()

    def run_checkpointed(self, fn, *args, preserve_rng_state=False, **kwargs):
        if not self.enable_checkpointing:
            return fn(*args, **kwargs)
        return jax.checkpoint(fn)(*args, **kwargs)   # JAX remat ~ torch checkpoint

    def memory_stats(self):
        cache_bytes = sum(
            math.prod(e['shape']) * jnp.dtype(e['dtype']).itemsize
            for e in self.cache.values()) / 1024 ** 2
        total = self.hit_count + self.miss_count
        return {
            'cache_size': len(self.cache),
            'memory_usage_mb': cache_bytes,
            'hit_rate': self.hit_count / total if total > 0 else 0,
            'total_stored': self.total_stored,
            'eviction_count': self.eviction_count,
            'enable_cache': self.enable_cache,
            'enable_checkpointing': self.enable_checkpointing,
        }

    def toggle_cache(self, enable):
        self.enable_cache = enable

    def toggle_checkpointing(self, enable):
        self.enable_checkpointing = enable

    # -- unified forward (mirrors the PyTorch forward) --------------------------
    def forward(self, input=None, operation='auto', tags=None, metadata=None,
                device=None, file_prefix='memory_forward',
                preserve_rng_state=False, checkpoint_fn=None):
        if operation == 'auto':
            if isinstance(input, jnp.ndarray):
                operation = 'cache'
            elif isinstance(input, str):
                operation = 'retrieve'
            elif isinstance(input, list) and all(isinstance(i, str) for i in input):
                operation = 'retrieve_by_tag'
            else:
                raise ValueError('Could not auto-detect operation from input type')

        if operation == 'cache':
            if not isinstance(input, jnp.ndarray):
                raise TypeError('Input must be a tensor for caching operation')
            return self.cache_item(input, tags=tags, metadata=metadata)
        elif operation == 'retrieve':
            if not isinstance(input, str):
                raise TypeError('Input must be a string key for retrieval')
            return self.retrieve(key=input, device=device)
        elif operation == 'retrieve_by_tag':
            tag_list = input if isinstance(input, list) else [input]
            if not all(isinstance(t, str) for t in tag_list):
                raise TypeError('Tags must be strings for tag-based retrieval')
            results = {}
            for tag in tag_list:
                items = self.retrieve(tag=tag, device=device)
                for i, item in enumerate(items):
                    item_key = f'{tag}_{i}'
                    if item_key not in results:
                        results[item_key] = {'tensor': item, 'count': 1}
                    else:
                        results[item_key]['count'] += 1
            return [v['tensor'] for v in results.values() if v['count'] == len(tag_list)]
        elif operation == 'checkpoint':
            # TODO(synk): disk checkpointing (torch.save of a .pt file) is host I/O
            # with no Pallas equivalent; intentionally not implemented here.
            raise NotImplementedError('disk checkpointing not implemented')
        elif operation == 'run_checkpointed':
            if checkpoint_fn is None:
                raise ValueError('checkpoint_fn must be provided for run_checkpointed operation')
            return self.run_checkpointed(checkpoint_fn, input,
                                         preserve_rng_state=preserve_rng_state,
                                         **(metadata or {}))
        elif operation == 'update':
            if not isinstance(input, tuple) or len(input) != 2:
                raise TypeError('Input must be a tuple (key, tensor) for update')
            key, tensor = input
            self.clear_cache(key=key)
            return self.cache_item(tensor, key=key, tags=tags, metadata=metadata)
        elif operation == 'stats':
            return self.memory_stats()
        else:
            raise ValueError(f'Unsupported operation: {operation}')

    __call__ = forward

    def __repr__(self):
        stats = self.memory_stats()
        return (f"PerceptionMemoryPallas(cache_size={stats['cache_size']}, "
                f"memory={stats['memory_usage_mb']:.2f}MB, "
                f"hit_rate={stats['hit_rate']:.2f})")


# ----------------------------------------------------------------------------
if __name__ == "__main__":
    rng = jax.random.PRNGKey(0)
    k1, k2 = jax.random.split(rng)

    # NCHW perception feature maps at small shapes.  NOTE: the module (like the
    # PyTorch spec) derives the cache key from (shape, dtype, device), so each
    # auto-keyed entry needs a distinct shape/dtype to get its own key.
    x = jax.random.normal(k1, (2, 4, 16, 16), jnp.float32)
    x2 = jax.random.normal(k2, (2, 4, 8, 8), jnp.float32)
    xi = jnp.arange(8 * 32, dtype=jnp.int32).reshape(8, 32)

    mem = PerceptionMemoryPallas(max_cache_size=4)

    # forward: auto-detected 'cache' (Pallas copy kernel into per-entry slab)
    key1 = mem.forward(x, tags=['frame'])
    key2 = mem.forward(x2, tags=['frame'])
    key3 = mem.forward(xi, tags=['ints'])
    assert isinstance(key1, str) and len(key1) == 64 and key1 != key2 and key1 != key3

    # forward: auto-detected 'retrieve' (Pallas copy kernel out of the slab)
    y = mem.forward(key1)
    y2 = mem.forward(key2)
    yi = mem.forward(key3)
    jax.block_until_ready((y, y2, yi))
    assert y.shape == x.shape and y.dtype == x.dtype
    assert bool(jnp.allclose(y, x)), 'retrieved tensor mismatch'
    assert bool(jnp.allclose(y2, x2)), 'second entry mismatch'
    assert bool(jnp.array_equal(yi, xi)), 'int32 entry round-trip mismatch'

    # caching later entries must never disturb earlier ones
    y1_again = mem.forward(key1)
    jax.block_until_ready(y1_again)
    assert bool(jnp.allclose(y1_again, x)), 'caching another entry corrupted this one'

    # forward: auto-detected 'retrieve_by_tag'
    items = mem.forward(['frame'])
    jax.block_until_ready(items)
    assert len(items) == 2
    assert bool(jnp.allclose(items[0], x)) and bool(jnp.allclose(items[1], x2))

    # 'update' operation (re-cache under an existing key)
    mem.forward((key1, x2), operation='update', tags=['frame'])
    y1_upd = mem.forward(key1)
    jax.block_until_ready(y1_upd)
    assert bool(jnp.allclose(y1_upd, x2)), 'update did not replace the entry'

    # stats / run_checkpointed (host-side bookkeeping + jax.checkpoint)
    stats = mem.forward(operation='stats')
    assert stats['cache_size'] == 3 and stats['hit_rate'] == 1.0
    z = mem.forward(x, operation='run_checkpointed', checkpoint_fn=lambda t: t * 2.0)
    jax.block_until_ready(z)
    assert bool(jnp.allclose(z, x * 2.0))

    print("KERNEL_OK")
</pallas_src>

<mosaic_0001>
module attributes {stable_mosaic.version = 11 : i64} {
  func.func @_dma_copy_kernel(%arg0: memref<8x512xf32, #tpu.memory_space<any>>, %arg1: memref<8x512xf32, #tpu.memory_space<any>>, %arg2: memref<!tpu.dma_semaphore, #tpu.memory_space<semaphore_mem>>) attributes {dimension_semantics = [], scalar_prefetch = 0 : i64, scratch_operands = 1 : i64, tpu.core_type = #tpu.core_type<tc>} {
    tpu.enqueue_dma source(%arg0 : memref<8x512xf32, #tpu.memory_space<any>>) target(%arg1 : memref<8x512xf32, #tpu.memory_space<any>>) target_semaphore(%arg2 : memref<!tpu.dma_semaphore, #tpu.memory_space<semaphore_mem>>)
    tpu.wait_dma2 semaphore(%arg2 : memref<!tpu.dma_semaphore, #tpu.memory_space<semaphore_mem>>) src(%arg0 : memref<8x512xf32, #tpu.memory_space<any>>) dst(%arg1 : memref<8x512xf32, #tpu.memory_space<any>>)
    return
  }
}

module attributes {stable_mosaic.version = 11 : i64} {
  func.func @_tiled_copy_kernel(%arg0: i32, %arg1: memref<8x512xf32, #tpu.memory_space<vmem>>, %arg2: memref<8x512xf32, #tpu.memory_space<vmem>>) attributes {dimension_semantics = [#tpu.dimension_semantics<arbitrary>], iteration_bounds = array<i64: 1>, scalar_prefetch = 0 : i64, scratch_operands = 0 : i64, tpu.core_type = #tpu.core_type<tc>, window_params = [{transform_indices = @transform_0, window_bounds = array<i64: 8, 512>}, {transform_indices = @transform_1, window_bounds = array<i64: 8, 512>}]} {
    %c0 = arith.constant 0 : index
    %c0_0 = arith.constant 0 : index
    %0 = vector.load %arg1[%c0, %c0_0] : memref<8x512xf32, #tpu.memory_space<vmem>>, vector<8x512xf32>
    %c0_1 = arith.constant 0 : index
    %c0_2 = arith.constant 0 : index
    %1 = vector.load %arg2[%c0_1, %c0_2] : memref<8x512xf32, #tpu.memory_space<vmem>>, vector<8x512xf32>
    tpu.vector_store %arg2[%c0_1, %c0_2], %0 {strides = array<i32>} : memref<8x512xf32, #tpu.memory_space<vmem>>, vector<8x512xf32>,
    return
  }
  func.func @transform_0(%arg0: i32) -> (i32, i32) {
    %c0_i32 = arith.constant 0 : i32
    %c0_i32_0 = arith.constant 0 : i32
    return %arg0, %c0_i32 : i32, i32
  }
  func.func @transform_1(%arg0: i32) -> (i32, i32) {
    %c0_i32 = arith.constant 0 : i32
    %c0_i32_0 = arith.constant 0 : i32
    return %arg0, %c0_i32 : i32, i32
  }
}

</mosaic_0001>

<llo_original>
// kernel: tpu_custom_call.1
$region0: #{tpu_custom_call.1}
  #allocation0 [shape = 'u32[]', space=smem, size = 0x4, offset = 0x4, fixed_abs, tag = 'smem constant byte address 0x4 - core index']
  #allocation1 [shape = 'u32[144,128]{1,0:T(1,128)}', space=vmem, size = 0x12000, scoped, tag = 'internal scratch']
  #allocation2 [shape = 's32[1]{0}', space=sflag, size = 0x4, scoped, tag = 'scratch operand']
  #allocation3 [shape = 's32[]', space=sflag, size = 0x4, offset = 0, fixed_abs, tag = 'sflag constant byte address 0x0 - dummy sync flag']
  #allocation4 [shape = 'u32[0]{0}', space=smem, size = 0, offset = 0, fixed_abs, tag = 'smem constant byte address 0x0 - null']
  %s0 = inlined_call_operand.hbm [shape: f32[8,512], index: 0, kind: input, shape index: {}]
  %s1 = inlined_call_operand.hbm [shape: f32[8,512], index: 1, kind: output, shape index: {}]
  %s2 = sld [smem:[#allocation0]]
  $region2: #{tpu_custom_call.1} parent=0
    _
  %s4 = ssub.s32 1, %s2
  %s5 = scalar_select 0, %s4, %s2
  %s7 = sshll.u32 1, 14
  %s8 = sxor.u32 4294967295, %s7
  %s11 = sshll.u32 3, 24
  %s12 = sxor.u32 4294967295, %s11
  %s13 = sand.u32 0, %s12
  %s15 = sor.u32 %s13, 0
  %18 = dma.general %s0, 512, %s1, [#allocation2], [#allocation3], [#allocation4], %s15, 0
  %s19 = smul.u32 8, 1
  %s20 = smul.u32 %s19, 4
  %s21 = sshll.u32 %s20, 4
  %22 = dma.done [#allocation2], %s21
  %23 = vsyncmov [#allocation2]
  %s24 = vpop.sfrf %23
  %p25 = scmp.eq.s32.totalorder %s24, 0
  %p26 = pneg %p25
  %28 = shalt.err (%p26)

// kernel: _store_slab.1
$region0: #{_store_slab.1}
  #allocation0 [shape = 'u32[]', space=smem, size = 0x4, offset = 0x4, fixed_abs, tag = 'smem constant byte address 0x4 - core index']
  #allocation1 [shape = 'u32[144,128]{1,0:T(1,128)}', space=vmem, size = 0x12000, scoped, tag = 'internal scratch']
  %s0 = inlined_call_operand.hbm [shape: f32[8,512], index: 0, kind: input, shape index: {}]
  %s1 = inlined_call_operand.hbm [shape: f32[8,512], index: 1, kind: output, shape index: {}]
  %s2 = sld [smem:[#allocation0]]
  $region18: #{_store_slab.1} parent=0
    _
  %s4 = ssub.s32 1, %s2
  %s5 = scalar_select 0, %s4, %s2
  $region1: #{_store_slab.1} parent=0
    #allocation2 [shape = 'u8[16384]{0}', space=vmem, size = 0x4000, scoped, tag = 'input window, operand 0, single buffered']
    #allocation3 [shape = 's32[1]{0}', space=sflag, size = 0x4, scoped, tag = 'scoped memory for _store_slab.1']
    #allocation4 [shape = 's32[1]{0}', space=sflag, size = 0x4, scoped, tag = 'scoped memory for _store_slab.1']
    #allocation5 [shape = 'u8[16384]{0}', space=vmem, size = 0x4000, scoped, tag = 'output window, operand 0, single buffered']
    %6 = vsyncpa [#allocation3], 0
    %7 = vsyncpa [#allocation4], 0
    // Predicated region
    $region2: #{_store_slab.1} parent=1 // pred_check
      _
    $region3: #{_store_slab.1} parent=1 // pred_check_branch
      %9 = sbr.rel (0) target = $region5
    $region4: #{_store_slab.1} parent=1 // pred_region
      %s11 = ssub.s32 512, 512
      %12 = vsyncadd [#allocation3], %s11
      %s14 = sshll.u32 [#allocation2], 4
      %s15 = int_to_ptr.vmem [resolvable:$true] %s14
      %17 = dma.hbm_to_vmem [thread:$0]  %s0, 512, %s15, [#allocation3]
    $region5: #{_store_slab.1} parent=1 // pred_fallthru
      _
    // Predicated region
    $region6: #{_store_slab.1} parent=1 // pred_check
      _
    $region7: #{_store_slab.1} parent=1 // pred_check_branch
      %19 = sbr.rel (0) target = $region9
    $region8: #{_store_slab.1} parent=1 // pred_region
      %20 = dma.done [#allocation3], 512
    $region9: #{_store_slab.1} parent=1 // pred_fallthru
      _
    %v21 = vld [vmem:[#allocation2] sm:$0xff]
    %v22 = vld [vmem:[#allocation2 + $0x8] sm:$0xff]
    %v23 = vld [vmem:[#allocation2 + $0x10] sm:$0xff]
    %v24 = vld [vmem:[#allocation2 + $0x18] sm:$0xff]
    %25 = vst [vmem:[#allocation5] sm:$0xff] %v21
    %26 = vst [vmem:[#allocation5 + $0x8] sm:$0xff] %v22
    %27 = vst [vmem:[#allocation5 + $0x10] sm:$0xff] %v23
    %28 = vst [vmem:[#allocation5 + $0x18] sm:$0xff] %v24
    // Predicated region
    $region10: #{_store_slab.1} parent=1 // pred_check
      _
    $region11: #{_store_slab.1} parent=1 // pred_check_branch
      %30 = sbr.rel (0) target = $region13
    $region12: #{_store_slab.1} parent=1 // pred_region
      %s32 = ssub.s32 512, 512
      %33 = vsyncadd [#allocation4], %s32
      %s35 = sshll.u32 [#allocation5], 4
      %s36 = int_to_ptr.vmem [resolvable:$true] %s35
      %38 = dma.vmem_to_hbm [thread:$0]  %s36, 512, %s1, [#allocation4]
    $region13: #{_store_slab.1} parent=1 // pred_fallthru
      _
    // Predicated region
    $region14: #{_store_slab.1} parent=1 // pred_check
      _
    $region15: #{_store_slab.1} parent=1 // pred_check_branch
      %40 = sbr.rel (0) target = $region17
    $region16: #{_store_slab.1} parent=1 // pred_region
      %41 = dma.done [#allocation4], 512
    $region17: #{_store_slab.1} parent=1 // pred_fallthru
      _
    %42 = vsyncpa [#allocation3], 1
    %43 = vsyncpa [#allocation4], 1

</llo_original>
